<compile_context>
chip_gen: v7x
topology: tpu7x:2x2x1
jax: 0.10.0
libtpu: 0.0.40
codegen_flags: <defaults>
</compile_context>

<pallas_src>
import functools

import jax
import jax.numpy as jnp
from jax import lax
from jax.experimental import pallas as pl
from jax.experimental.pallas import tpu as pltpu


_EPS = 1e-07
_VMEM_LIMIT = 32 * 1024 * 1024   # explicit scoped-VMEM budget, safe on v5e/v6e/v7x


def _round_up(n, m):
    return ((n + m - 1) // m) * m


# ---------------------------------------------------------------------------
# Fused single-tile kernel (whole padded batch fits in one (.., TB) block).
# ---------------------------------------------------------------------------
def _fused_kernel(x_ref, w1_ref, b1_ref, w2_ref, b2_ref, w3_ref, b3_ref,
                  o_ref, *, batch):
    x = x_ref[...]                                                    # (16, TB)
    h1 = jnp.dot(w1_ref[...], x,
                 preferred_element_type=jnp.float32) + b1_ref[...]   # (20, TB)

    # Padded batch columns must not contribute to the whole-tensor statistics.
    col = lax.broadcasted_iota(jnp.int32, h1.shape, 1)
    valid = col < batch

    # torch: x_avg = sum(h1) / 20 ; x_std = sum((h1 - x_avg)^2) / 20
    x_avg = jnp.sum(jnp.where(valid, h1, 0.0)) / 20.0
    xm = h1 - x_avg
    x_std = jnp.sum(jnp.where(valid, xm * xm, 0.0)) / 20.0
    inv = 1.0 / (jnp.sqrt(x_std) + _EPS)       # scalar; eps OUTSIDE the sqrt
    a1 = jnp.tanh(xm * inv)                                           # (20, TB)

    h2 = jnp.dot(w2_ref[...], a1,
                 preferred_element_type=jnp.float32) + b2_ref[...]   # (40, TB)
    a2 = jnp.tanh(h2)

    out = jnp.dot(w3_ref[...], a2,
                  preferred_element_type=jnp.float32) + b3_ref[...]  # (4, TB)
    o_ref[...] = out.astype(o_ref.dtype)


def _forward_fused(x_t, params, batch):
    w1, b1, w2, b2, w3, b3 = params
    b_pad = x_t.shape[1]
    vmem = pl.BlockSpec(memory_space=pltpu.MemorySpace.VMEM)
    return pl.pallas_call(
        functools.partial(_fused_kernel, batch=batch),
        out_shape=jax.ShapeDtypeStruct((4, b_pad), jnp.float32),
        in_specs=[vmem] * 7,
        out_specs=vmem,
        compiler_params=pltpu.CompilerParams(vmem_limit_bytes=_VMEM_LIMIT),
    )(x_t, w1, b1, w2, b2, w3, b3)


# ---------------------------------------------------------------------------
# Tiled two-phase path.
# ---------------------------------------------------------------------------
def _stats_kernel(x_ref, w1_ref, b1_ref, sums_ref, *, batch, block_b):
    """Phase 1: accumulate S1 = sum(h1), S2 = sum(h1^2) over all batch tiles."""
    i = pl.program_id(0)

    @pl.when(i == 0)
    def _init():
        sums_ref[...] = jnp.zeros_like(sums_ref)

    h1 = jnp.dot(w1_ref[...], x_ref[...],
                 preferred_element_type=jnp.float32) + b1_ref[...]   # (20, TB)
    col = i * block_b + lax.broadcasted_iota(jnp.int32, h1.shape, 1)
    h1 = jnp.where(col < batch, h1, 0.0)      # mask padded batch columns

    s1 = jnp.sum(h1)
    s2 = jnp.sum(h1 * h1)
    lane = lax.broadcasted_iota(jnp.int32, sums_ref.shape, 1)
    sums_ref[...] += (jnp.where(lane == 0, s1, 0.0) +
                      jnp.where(lane == 1, s2, 0.0))


def _fwd_kernel(stats_ref, x_ref, w1_ref, b1_ref, w2_ref, b2_ref,
                w3_ref, b3_ref, o_ref):
    """Phase 2: per-tile forward using precomputed scalar stats (SMEM)."""
    x_avg = stats_ref[0]
    inv = stats_ref[1]

    h1 = jnp.dot(w1_ref[...], x_ref[...],
                 preferred_element_type=jnp.float32) + b1_ref[...]   # (20, TB)
    a1 = jnp.tanh((h1 - x_avg) * inv)
    h2 = jnp.dot(w2_ref[...], a1,
                 preferred_element_type=jnp.float32) + b2_ref[...]   # (40, TB)
    a2 = jnp.tanh(h2)
    out = jnp.dot(w3_ref[...], a2,
                  preferred_element_type=jnp.float32) + b3_ref[...]  # (4, TB)
    o_ref[...] = out.astype(o_ref.dtype)


def policy_net_forward(x, params, *, block_b=1024):
    """x: (B, 16) float32. Returns (B, 4) float32 (== torch's .view(-1, 4))."""
    w1, b1, w2, b2, w3, b3 = params
    B = x.shape[0]

    # Batch goes on the lane axis; pad to a multiple of 128 (lane width) and
    # pick the batch tile (multiple of 128, capped by block_b).
    tb = max(128, _round_up(min(block_b, _round_up(B, 128)), 128))
    b_pad = _round_up(B, tb)
    n_tiles = b_pad // tb

    x_t = jnp.zeros((16, b_pad), jnp.float32).at[:, :B].set(
        x.T.astype(jnp.float32))

    if n_tiles == 1:
        out_t = _forward_fused(x_t, params, B)
        return out_t[:, :B].T

    # ---- phase 1: whole-tensor statistics across batch tiles --------------
    full = lambda i: (0, 0)                    # weights/biases stay resident
    x_spec = pl.BlockSpec((16, tb), lambda i: (0, i))

    sums = pl.pallas_call(
        functools.partial(_stats_kernel, batch=B, block_b=tb),
        out_shape=jax.ShapeDtypeStruct((1, 128), jnp.float32),
        grid=(n_tiles,),
        in_specs=[x_spec,
                  pl.BlockSpec((20, 16), full),
                  pl.BlockSpec((20, 1), full)],
        out_specs=pl.BlockSpec((1, 128), full),
        compiler_params=pltpu.CompilerParams(
            dimension_semantics=("arbitrary",),   # cross-tile accumulation
            vmem_limit_bytes=_VMEM_LIMIT),
    )(x_t, w1, b1)

    s1 = sums[0, 0]
    s2 = sums[0, 1]
    # torch: x_avg = sum(h1)/20 ; x_std = sum((h1 - x_avg)^2)/20
    # (expanded via the sum-of-squares identity so only one pass is needed).
    numel = jnp.float32(B * 20)
    x_avg = s1 / 20.0
    x_std = (s2 - 2.0 * x_avg * s1 + numel * x_avg * x_avg) / 20.0
    inv = 1.0 / (jnp.sqrt(x_std) + _EPS)       # eps OUTSIDE the sqrt (torch)
    stats = jnp.stack([x_avg, inv]).astype(jnp.float32)       # (2,)

    # ---- phase 2: per-tile forward, batch axis parallel --------------------
    out_t = pl.pallas_call(
        _fwd_kernel,
        out_shape=jax.ShapeDtypeStruct((4, b_pad), jnp.float32),
        grid=(n_tiles,),
        in_specs=[pl.BlockSpec(memory_space=pltpu.MemorySpace.SMEM),  # stats
                  x_spec,
                  pl.BlockSpec((20, 16), full),
                  pl.BlockSpec((20, 1), full),
                  pl.BlockSpec((40, 20), full),
                  pl.BlockSpec((40, 1), full),
                  pl.BlockSpec((4, 40), full),
                  pl.BlockSpec((4, 1), full)],
        out_specs=pl.BlockSpec((4, tb), lambda i: (0, i)),
        compiler_params=pltpu.CompilerParams(
            dimension_semantics=("parallel",),   # uses both TCs on v7x
            vmem_limit_bytes=_VMEM_LIMIT),
    )(stats, x_t, w1, b1, w2, b2, w3, b3)

    return out_t[:, :B].T


# ---------------------------------------------------------------------------
# Init + pure-JAX reference (torch semantics) for validation.
# ---------------------------------------------------------------------------
def init_params(key):
    """nn.Linear-style init; weights kept in torch (out_features, in_features)."""
    def linear_init(k, fan_in, fan_out):
        kw, kb = jax.random.split(k)
        bound = 1.0 / jnp.sqrt(jnp.float32(fan_in))
        w = jax.random.uniform(kw, (fan_out, fan_in), jnp.float32, -bound, bound)
        b = jax.random.uniform(kb, (fan_out, 1), jnp.float32, -bound, bound)
        return w, b

    k1, k2, k3 = jax.random.split(key, 3)
    w1, b1 = linear_init(k1, 16, 20)
    w2, b2 = linear_init(k2, 20, 40)
    w3, b3 = linear_init(k3, 40, 4)
    return (w1, b1, w2, b2, w3, b3)


def reference_forward(x, params):
    w1, b1, w2, b2, w3, b3 = params
    hp = jax.lax.Precision.HIGHEST
    h = jnp.dot(x, w1.T, precision=hp) + b1.reshape(1, -1)
    x_avg = jnp.sum(h) / 20.0
    xm = h - x_avg
    x_std = jnp.sum(xm * xm) / 20.0
    xn = xm / (jnp.sqrt(x_std) + _EPS)
    h = jnp.tanh(xn)
    h = jnp.tanh(jnp.dot(h, w2.T, precision=hp) + b2.reshape(1, -1))
    out = jnp.dot(h, w3.T, precision=hp) + b3.reshape(1, -1)
    return out.reshape(-1, 4)


if __name__ == "__main__":
    key = jax.random.PRNGKey(0)
    k_params, k_x1, k_x2 = jax.random.split(key, 3)
    params = init_params(k_params)

    # 1) Frozen-Lake-style tiny batch (single fused launch).
    x_small = jax.random.uniform(k_x1, (2, 16), jnp.float32)
    out_small = jax.block_until_ready(policy_net_forward(x_small, params))
    ref_small = reference_forward(x_small, params)
    assert out_small.shape == (2, 4)
    assert jnp.allclose(out_small, ref_small, atol=1e-4, rtol=1e-4), (
        out_small, ref_small)

    # 2) Larger batch exercising the tiled two-phase (stats + forward) path.
    x_big = jax.random.uniform(k_x2, (300, 16), jnp.float32)
    out_big = jax.block_until_ready(
        policy_net_forward(x_big, params, block_b=128))
    ref_big = reference_forward(x_big, params)
    assert out_big.shape == (300, 4)
    assert jnp.allclose(out_big, ref_big, atol=1e-4, rtol=1e-4), (
        float(jnp.max(jnp.abs(out_big - ref_big))))

    print("KERNEL_OK")
</pallas_src>

<mosaic_0001>
module attributes {stable_mosaic.version = 11 : i64} {
  func.func @_fused_kernel(%arg0: memref<16x128xf32, #tpu.memory_space<vmem>>, %arg1: memref<20x16xf32, #tpu.memory_space<vmem>>, %arg2: memref<20x1xf32, #tpu.memory_space<vmem>>, %arg3: memref<40x20xf32, #tpu.memory_space<vmem>>, %arg4: memref<40x1xf32, #tpu.memory_space<vmem>>, %arg5: memref<4x40xf32, #tpu.memory_space<vmem>>, %arg6: memref<4x1xf32, #tpu.memory_space<vmem>>, %arg7: memref<4x128xf32, #tpu.memory_space<vmem>>) attributes {dimension_semantics = [], scalar_prefetch = 0 : i64, scratch_operands = 0 : i64, tpu.core_type = #tpu.core_type<tc>} {
    %c0 = arith.constant 0 : index
    %c0_0 = arith.constant 0 : index
    %0 = vector.load %arg0[%c0, %c0_0] : memref<16x128xf32, #tpu.memory_space<vmem>>, vector<16x128xf32>
    %c0_1 = arith.constant 0 : index
    %c0_2 = arith.constant 0 : index
    %1 = vector.load %arg1[%c0_1, %c0_2] : memref<20x16xf32, #tpu.memory_space<vmem>>, vector<20x16xf32>
    %cst = arith.constant dense<0.000000e+00> : vector<20x128xf32>
    %2 = tpu.matmul %1, %0, %cst {dimension_numbers = #tpu.dot_dimension_numbers<[1], [0], [0], [1], [0, 0, 1, 1], [], []>} : vector<20x16xf32>, vector<16x128xf32>, vector<20x128xf32> -> vector<20x128xf32>
    %c0_3 = arith.constant 0 : index
    %c0_4 = arith.constant 0 : index
    %3 = vector.load %arg2[%c0_3, %c0_4] : memref<20x1xf32, #tpu.memory_space<vmem>>, vector<20x1xf32>
    %4 = vector.broadcast %3 : vector<20x1xf32> to vector<20x128xf32>
    %5 = arith.addf %2, %4 : vector<20x128xf32>
    %6 = tpu.iota {dimensions = array<i32: 1>} : vector<20x128xi32>
    %c2_i32 = arith.constant 2 : i32
    %7 = vector.broadcast %c2_i32 : i32 to vector<20x128xi32>
    %8 = arith.cmpi slt, %6, %7 : vector<20x128xi32>
    %cst_5 = arith.constant 0.000000e+00 : f32
    %9 = vector.broadcast %cst_5 : f32 to vector<20x128xf32>
    %10 = arith.select %8, %5, %9 : vector<20x128xi1>, vector<20x128xf32>
    %11 = vector.shape_cast %10 : vector<20x128xf32> to vector<1x20x128xf32>
    %cst_6 = arith.constant dense<0.000000e+00> : vector<1xf32>
    %12 = vector.multi_reduction <add>, %11, %cst_6 [1, 2] : vector<1x20x128xf32> to vector<1xf32>
    %13 = vector.shape_cast %12 : vector<1xf32> to vector<1x1x1xf32>
    %14 = vector.extract %13[0, 0, 0] : f32 from vector<1x1x1xf32>
    %cst_7 = arith.constant 2.000000e+01 : f32
    %15 = arith.divf %14, %cst_7 : f32
    %16 = vector.broadcast %15 : f32 to vector<20x128xf32>
    %17 = arith.subf %5, %16 : vector<20x128xf32>
    %18 = arith.mulf %17, %17 : vector<20x128xf32>
    %cst_8 = arith.constant 0.000000e+00 : f32
    %19 = vector.broadcast %cst_8 : f32 to vector<20x128xf32>
    %20 = arith.select %8, %18, %19 : vector<20x128xi1>, vector<20x128xf32>
    %21 = vector.shape_cast %20 : vector<20x128xf32> to vector<1x20x128xf32>
    %cst_9 = arith.constant dense<0.000000e+00> : vector<1xf32>
    %22 = vector.multi_reduction <add>, %21, %cst_9 [1, 2] : vector<1x20x128xf32> to vector<1xf32>
    %23 = vector.shape_cast %22 : vector<1xf32> to vector<1x1x1xf32>
    %24 = vector.extract %23[0, 0, 0] : f32 from vector<1x1x1xf32>
    %cst_10 = arith.constant 2.000000e+01 : f32
    %25 = arith.divf %24, %cst_10 : f32
    %26 = math.sqrt %25 : f32
    %cst_11 = arith.constant 1.000000e-07 : f32
    %27 = arith.addf %26, %cst_11 : f32
    %cst_12 = arith.constant 1.000000e+00 : f32
    %28 = arith.divf %cst_12, %27 : f32
    %29 = vector.broadcast %28 : f32 to vector<20x128xf32>
    %30 = arith.mulf %17, %29 : vector<20x128xf32>
    %31 = math.tanh %30 : vector<20x128xf32>
    %c0_13 = arith.constant 0 : index
    %c0_14 = arith.constant 0 : index
    %32 = vector.load %arg3[%c0_13, %c0_14] : memref<40x20xf32, #tpu.memory_space<vmem>>, vector<40x20xf32>
    %cst_15 = arith.constant dense<0.000000e+00> : vector<40x128xf32>
    %33 = tpu.matmul %32, %31, %cst_15 {dimension_numbers = #tpu.dot_dimension_numbers<[1], [0], [0], [1], [0, 0, 1, 1], [], []>} : vector<40x20xf32>, vector<20x128xf32>, vector<40x128xf32> -> vector<40x128xf32>
    %c0_16 = arith.constant 0 : index
    %c0_17 = arith.constant 0 : index
    %34 = vector.load %arg4[%c0_16, %c0_17] : memref<40x1xf32, #tpu.memory_space<vmem>>, vector<40x1xf32>
    %35 = vector.broadcast %34 : vector<40x1xf32> to vector<40x128xf32>
    %36 = arith.addf %33, %35 : vector<40x128xf32>
    %37 = math.tanh %36 : vector<40x128xf32>
    %c0_18 = arith.constant 0 : index
    %c0_19 = arith.constant 0 : index
    %38 = vector.load %arg5[%c0_18, %c0_19] : memref<4x40xf32, #tpu.memory_space<vmem>>, vector<4x40xf32>
    %cst_20 = arith.constant dense<0.000000e+00> : vector<4x128xf32>
    %39 = tpu.matmul %38, %37, %cst_20 {dimension_numbers = #tpu.dot_dimension_numbers<[1], [0], [0], [1], [0, 0, 1, 1], [], []>} : vector<4x40xf32>, vector<40x128xf32>, vector<4x128xf32> -> vector<4x128xf32>
    %c0_21 = arith.constant 0 : index
    %c0_22 = arith.constant 0 : index
    %40 = vector.load %arg6[%c0_21, %c0_22] : memref<4x1xf32, #tpu.memory_space<vmem>>, vector<4x1xf32>
    %41 = vector.broadcast %40 : vector<4x1xf32> to vector<4x128xf32>
    %42 = arith.addf %39, %41 : vector<4x128xf32>
    %c0_23 = arith.constant 0 : index
    %c0_24 = arith.constant 0 : index
    %43 = vector.load %arg7[%c0_23, %c0_24] : memref<4x128xf32, #tpu.memory_space<vmem>>, vector<4x128xf32>
    tpu.vector_store %arg7[%c0_23, %c0_24], %42 {strides = array<i32>} : memref<4x128xf32, #tpu.memory_space<vmem>>, vector<4x128xf32>,
    return
  }
}

</mosaic_0001>

<llo_original>
// kernel: tpu_custom_call.1
$region0: #{tpu_custom_call.1}
  #allocation0 [shape = 'u32[]', space=smem, size = 0x4, offset = 0x4, fixed_abs, tag = 'smem constant byte address 0x4 - core index']
  #allocation1 [shape = 'u32[144,128]{1,0:T(1,128)}', space=vmem, size = 0x12000, scoped, tag = 'internal scratch']
  %s0 = inlined_call_operand.vmem [shape: f32[16,128], index: 0, kind: input, shape index: {}]
  %s1 = inlined_call_operand.vmem [shape: f32[20,16], index: 1, kind: input, shape index: {}]
  %s2 = inlined_call_operand.vmem [shape: f32[20,1], index: 2, kind: input, shape index: {}]
  %s3 = inlined_call_operand.vmem [shape: f32[40,20], index: 3, kind: input, shape index: {}]
  %s4 = inlined_call_operand.vmem [shape: f32[40,1], index: 4, kind: input, shape index: {}]
  %s5 = inlined_call_operand.vmem [shape: f32[4,40], index: 5, kind: input, shape index: {}]
  %s6 = inlined_call_operand.vmem [shape: f32[4,1], index: 6, kind: input, shape index: {}]
  %s7 = inlined_call_operand.hbm [shape: f32[4,128], index: 7, kind: output, shape index: {}]
  %s8 = sld [smem:[#allocation0]]
  $region38: #{tpu_custom_call.1} parent=0
    _
  %s10 = ssub.s32 1, %s8
  %s11 = scalar_select 0, %s10, %s8
  $region1: #{tpu_custom_call.1} parent=0
    #allocation2 [shape = 'u8[2048]{0}', space=vmem, size = 0x800, scoped, tag = 'output window, operand 0, single buffered']
    #allocation3 [shape = 's32[1]{0}', space=sflag, size = 0x4, scoped, tag = 'scoped memory for tpu_custom_call.1']
    %12 = vsyncpa [#allocation3], 0
    // Predicated region
    $region2: #{tpu_custom_call.1} parent=1 // pred_check
      _
    $region3: #{tpu_custom_call.1} parent=1 // pred_check_branch
      %14 = sbr.rel (0) target = $region5
    $region4: #{tpu_custom_call.1} parent=1 // pred_region
      _
    $region5: #{tpu_custom_call.1} parent=1 // pred_fallthru
      _
    // Predicated region
    $region6: #{tpu_custom_call.1} parent=1 // pred_check
      _
    $region7: #{tpu_custom_call.1} parent=1 // pred_check_branch
      %16 = sbr.rel (0) target = $region9
    $region8: #{tpu_custom_call.1} parent=1 // pred_region
      _
    $region9: #{tpu_custom_call.1} parent=1 // pred_fallthru
      _
    // Predicated region
    $region10: #{tpu_custom_call.1} parent=1 // pred_check
      _
    $region11: #{tpu_custom_call.1} parent=1 // pred_check_branch
      %18 = sbr.rel (0) target = $region13
    $region12: #{tpu_custom_call.1} parent=1 // pred_region
      _
    $region13: #{tpu_custom_call.1} parent=1 // pred_fallthru
      _
    // Predicated region
    $region14: #{tpu_custom_call.1} parent=1 // pred_check
      _
    $region15: #{tpu_custom_call.1} parent=1 // pred_check_branch
      %20 = sbr.rel (0) target = $region17
    $region16: #{tpu_custom_call.1} parent=1 // pred_region
      _
    $region17: #{tpu_custom_call.1} parent=1 // pred_fallthru
      _
    // Predicated region
    $region18: #{tpu_custom_call.1} parent=1 // pred_check
      _
    $region19: #{tpu_custom_call.1} parent=1 // pred_check_branch
      %22 = sbr.rel (0) target = $region21
    $region20: #{tpu_custom_call.1} parent=1 // pred_region
      _
    $region21: #{tpu_custom_call.1} parent=1 // pred_fallthru
      _
    // Predicated region
    $region22: #{tpu_custom_call.1} parent=1 // pred_check
      _
    $region23: #{tpu_custom_call.1} parent=1 // pred_check_branch
      %24 = sbr.rel (0) target = $region25
    $region24: #{tpu_custom_call.1} parent=1 // pred_region
      _
    $region25: #{tpu_custom_call.1} parent=1 // pred_fallthru
      _
    // Predicated region
    $region26: #{tpu_custom_call.1} parent=1 // pred_check
      _
    $region27: #{tpu_custom_call.1} parent=1 // pred_check_branch
      %26 = sbr.rel (0) target = $region29
    $region28: #{tpu_custom_call.1} parent=1 // pred_region
      _
    $region29: #{tpu_custom_call.1} parent=1 // pred_fallthru
      _
    %v27 = vld [vmem:[%s0] sm:$0xff]
    %v28 = vld [vmem:[%s0 + $0x8] sm:$0xff]
    %v29 = vld [vmem:[%s1] sm:$0xff]
    %v30 = vld [vmem:[%s1 + $0x8] sm:$0xff]
    %v31 = vld [vmem:[%s1 + $0x10] sm:$0xf]
    %v32 = vld [vmem:[%s2] sm:$0xff]
    %v33 = vld [vmem:[%s2 + $0x8] sm:$0xff]
    %v34 = vld [vmem:[%s2 + $0x10] sm:$0xf]
    %36 = vset.pattern.permute.xlu0 0
    %37 = vperm.xlu0 %36, %v32
    %v38 = vpop.permute.xlu0 %37
    %41 = vset.pattern.permute.xlu0 0
    %42 = vperm.xlu0 %41, %v33
    %v43 = vpop.permute.xlu0 %42
    %46 = vset.pattern.permute.xlu0 0
    %47 = vperm.xlu0 %46, %v34
    %v48 = vpop.permute.xlu0 %47
    %vm50 = vcmask 130048
    %v52 = vsel %vm50, %v29, 0
    %v55 = vsel %vm50, %v30, 0
    %v58 = vsel %vm50, %v31, 0
    %60 = vmatprep.subr.mxu0 0.0
    %61 = vmatpush1.msra.mxu0 %v27
    %62 = vmatprep.subr.mxu0 0.0
    %63 = vmatpush1.msra.mxu0 %v28
    %64 = vmatprep.subr.mxu0 0.0
    %65 = vmatpush1.msra.mxu0 0.0
    %66 = vmatprep.subr.mxu0 0.0
    %67 = vmatpush1.msra.mxu0 0.0
    %68 = vmatprep.subr.mxu0 0.0
    %69 = vmatpush1.msra.mxu0 0.0
    %70 = vmatprep.subr.mxu0 0.0
    %71 = vmatpush1.msra.mxu0 0.0
    %72 = vmatprep.subr.mxu0 0.0
    %73 = vmatpush1.msra.mxu0 0.0
    %74 = vmatprep.subr.mxu0 0.0
    %75 = vmatpush1.msra.mxu0 0.0
    %76 = vmatprep.subr.mxu0 0.0
    %77 = vmatpush1.msra.mxu0 0.0
    %78 = vmatprep.subr.mxu0 0.0
    %79 = vmatpush1.msra.mxu0 0.0
    %80 = vmatprep.subr.mxu0 0.0
    %81 = vmatpush1.msra.mxu0 0.0
    %82 = vmatprep.subr.mxu0 0.0
    %83 = vmatpush1.msra.mxu0 0.0
    %84 = vmatprep.subr.mxu0 0.0
    %85 = vmatpush1.msra.mxu0 0.0
    %86 = vmatprep.subr.mxu0 0.0
    %87 = vmatpush1.msra.mxu0 0.0
    %88 = vmatprep.subr.mxu0 0.0
    %89 = vmatpush1.msra.mxu0 0.0
    %90 = vmatprep.subr.mxu0 0.0
    %91 = vmatpush1.msra.mxu0 0.0
    %92 = vmatprep.subr.mxu0 0.0
    %93 = vmatpush1.msra.mxu0 0.0
    %94 = vmatprep.subr.mxu0 0.0
    %95 = vmatpush1.msra.mxu0 0.0
    %96 = vmatprep.subr.mxu0 0.0
    %97 = vmatpush1.msra.mxu0 0.0
    %98 = vmatprep.subr.mxu0 0.0
    %99 = vmatpush1.msra.mxu0 0.0
    %100 = vmatprep.subr.mxu0 0.0
    %101 = vmatpush1.msra.mxu0 0.0
    %102 = vmatprep.subr.mxu0 0.0
    %103 = vmatpush1.msra.mxu0 0.0
    %104 = vmatprep.subr.mxu0 0.0
    %105 = vmatpush1.msra.mxu0 0.0
    %106 = vmatprep.subr.mxu0 0.0
    %107 = vmatpush1.msra.mxu0 0.0
    %108 = vmatprep.subr.mxu0 0.0
    %109 = vmatpush1.msra.mxu0 0.0
    %110 = vmatprep.subr.mxu0 0.0
    %111 = vmatpush1.msra.mxu0 0.0
    %112 = vmatprep.subr.mxu0 0.0
    %113 = vmatpush1.msra.mxu0 0.0
    %114 = vmatprep.subr.mxu0 0.0
    %115 = vmatpush1.msra.mxu0 0.0
    %116 = vmatprep.subr.mxu0 0.0
    %117 = vmatpush1.msra.mxu0 0.0
    %118 = vmatprep.subr.mxu0 0.0
    %119 = vmatpush1.msra.mxu0 0.0
    %120 = vmatprep.subr.mxu0 0.0
    %121 = vmatpush1.msra.mxu0 0.0
    %122 = vmatprep.subr.mxu0 0.0
    %123 = vmatpush1.msra.mxu0 0.0
    %124 = vmatprep.mubr.f32.mxu0 0.0
    %125 = vmatmul.mubr.f32.gmra.mrb[0].mxu0 %v52
    %v126 = vpop.f32.mrb[0].mxu0
    %v127 = vadd.f32 %v38, %v126
    %v128 = vpop.f32.mrb[0].mxu0
    %129 = vmatprep.mubr.f32.mxu0 0.0
    %130 = vmatmul.mubr.f32.gmra.mrb[0].mxu0 %v55
    %v131 = vpop.f32.mrb[0].mxu0
    %v132 = vadd.f32 %v43, %v131
    %v133 = vpop.f32.mrb[0].mxu0
    %134 = vmatprep.mubr.f32.mxu0 0.0
    %135 = vmatmul.mubr.f32.gmra.mrb[0].mxu0 %v58
    %v136 = vpop.f32.mrb[0].mxu0
    %v137 = vadd.f32 %v48, %v136
    %v138 = vpop.f32.mrb[0].mxu0
    %139 = vdwg.mxu0
    %v140 = vlaneseq
    %v141 = vand.u32 %v140, 127
    %vm142 = vcmp.lt.s32.totalorder %v141, 2
    %v143 = vsel %vm142, %v127, 0.0
    %v144 = vsel %vm142, %v132, 0.0
    %v145 = vsel %vm142, %v137, 0.0
    %v146 = vadd.f32 %v143, %v144
    %vm147 = vcmask 1043456
    %v148 = vsel %vm147, %v145, 0.0
    %v149 = vadd.f32 %v146, %v148
    %150 = vadd.xlane.f32.xlu0 %v149
    %v151 = vpop.xlane.xlu0 %150
    %v152 = vrot.slane %v151, 4
    %v153 = vadd.f32 %v151, %v152
    %v154 = vrot.slane %v153, 2
    %v155 = vadd.f32 %v153, %v154
    %v156 = vrot.slane %v155, 1
    %v157 = vadd.f32 %v155, %v156
    %s158 = vtos %v157
    %v159 = vrcp.pop 20.0
    %s160 = vtos %v159
    %s161 = smul.f32 %s158, %s160
    %v162 = vstv %s161
    %v163 = vsub.f32 %v127, %v162
    %v164 = vsub.f32 %v132, %v162
    %v165 = vsub.f32 %v137, %v162
    %v166 = vmul.f32 %v163, %v163
    %v167 = vmul.f32 %v164, %v164
    %v168 = vmul.f32 %v165, %v165
    %v169 = vsel %vm142, %v166, 0.0
    %v170 = vsel %vm142, %v167, 0.0
    %v171 = vsel %vm142, %v168, 0.0
    %v172 = vadd.f32 %v169, %v170
    %v173 = vsel %vm147, %v171, 0.0
    %v174 = vadd.f32 %v172, %v173
    %175 = vadd.xlane.f32.xlu0 %v174
    %v176 = vpop.xlane.xlu0 %175
    %v177 = vrot.slane %v176, 4
    %v178 = vadd.f32 %v176, %v177
    %v179 = vrot.slane %v178, 2
    %v180 = vadd.f32 %v178, %v179
    %v181 = vrot.slane %v180, 1
    %v182 = vadd.f32 %v180, %v181
    %s183 = vtos %v182
    %v184 = vrcp.pop 20.0
    %s185 = vtos %v184
    %s186 = smul.f32 %s183, %s185
    %v187 = vstv %s186
    %v188 = vrsqrt.pop %v187
    %v189 = vmul.f32 %v187, %v188
    %vm190 = vcmp.eq.f32.partialorder %v187, inf
    %v191 = vsel %vm190, %v187, %v189
    %vm192 = vcmp.eq.f32.partialorder %v187, 0.0
    %v193 = vand.u32 %v187, 2147483648
    %v194 = vsel %vm192, %v193, %v191
    %s195 = vtos %v194
    %s196 = sadd.f32 %s195, 1e-07
    %v197 = vstv %s196
    %v198 = vrcp.pop %v197
    %s199 = vtos %v198
    %v200 = vstv %s199
    %v201 = vmul.f32 %v163, %v200
    %v202 = vmul.f32 %v164, %v200
    %v203 = vmul.f32 %v165, %v200
    %v204 = vtanh.pop %v201
    %v205 = vtanh.pop %v202
    %v206 = vtanh.pop %v203
    %v207 = vld [vmem:[%s3] sm:$0xff]
    %v208 = vld [vmem:[%s3 + $0x8] sm:$0xff]
    %v209 = vld [vmem:[%s3 + $0x10] sm:$0xff]
    %v210 = vld [vmem:[%s3 + $0x18] sm:$0xff]
    %v211 = vld [vmem:[%s3 + $0x20] sm:$0xff]
    %v212 = vld [vmem:[%s4] sm:$0xff]
    %v213 = vld [vmem:[%s4 + $0x8] sm:$0xff]
    %v214 = vld [vmem:[%s4 + $0x10] sm:$0xff]
    %v215 = vld [vmem:[%s4 + $0x18] sm:$0xff]
    %v216 = vld [vmem:[%s4 + $0x20] sm:$0xff]
    %218 = vset.pattern.permute.xlu0 0
    %219 = vperm.xlu0 %218, %v212
    %v220 = vpop.permute.xlu0 %219
    %223 = vset.pattern.permute.xlu0 0
    %224 = vperm.xlu0 %223, %v213
    %v225 = vpop.permute.xlu0 %224
    %228 = vset.pattern.permute.xlu0 0
    %229 = vperm.xlu0 %228, %v214
    %v230 = vpop.permute.xlu0 %229
    %233 = vset.pattern.permute.xlu0 0
    %234 = vperm.xlu0 %233, %v215
    %v235 = vpop.permute.xlu0 %234
    %238 = vset.pattern.permute.xlu0 0
    %239 = vperm.xlu0 %238, %v216
    %v240 = vpop.permute.xlu0 %239
    %vm242 = vcmask 162816
    %v244 = vsel %vm242, %v207, 0
    %v247 = vsel %vm242, %v208, 0
    %v250 = vsel %vm242, %v209, 0
    %v253 = vsel %vm242, %v210, 0
    %v256 = vsel %vm242, %v211, 0
    %v259 = vsel %vm147, %v206, 0
    %261 = vmatprep.subr.mxu0 0.0
    %262 = vmatpush1.msra.mxu0 %v204
    %263 = vmatprep.subr.mxu0 0.0
    %264 = vmatpush1.msra.mxu0 %v205
    %265 = vmatprep.subr.mxu0 0.0
    %266 = vmatpush1.msra.mxu0 %v259
    %267 = vmatprep.subr.mxu0 0.0
    %268 = vmatpush1.msra.mxu0 0.0
    %269 = vmatprep.subr.mxu0 0.0
    %270 = vmatpush1.msra.mxu0 0.0
    %271 = vmatprep.subr.mxu0 0.0
    %272 = vmatpush1.msra.mxu0 0.0
    %273 = vmatprep.subr.mxu0 0.0
    %274 = vmatpush1.msra.mxu0 0.0
    %275 = vmatprep.subr.mxu0 0.0
    %276 = vmatpush1.msra.mxu0 0.0
    %277 = vmatprep.subr.mxu0 0.0
    %278 = vmatpush1.msra.mxu0 0.0
    %279 = vmatprep.subr.mxu0 0.0
    %280 = vmatpush1.msra.mxu0 0.0
    %281 = vmatprep.subr.mxu0 0.0
    %282 = vmatpush1.msra.mxu0 0.0
    %283 = vmatprep.subr.mxu0 0.0
    %284 = vmatpush1.msra.mxu0 0.0
    %285 = vmatprep.subr.mxu0 0.0
    %286 = vmatpush1.msra.mxu0 0.0
    %287 = vmatprep.subr.mxu0 0.0
    %288 = vmatpush1.msra.mxu0 0.0
    %289 = vmatprep.subr.mxu0 0.0
    %290 = vmatpush1.msra.mxu0 0.0
    %291 = vmatprep.subr.mxu0 0.0
    %292 = vmatpush1.msra.mxu0 0.0
    %293 = vmatprep.subr.mxu0 0.0
    %294 = vmatpush1.msra.mxu0 0.0
    %295 = vmatprep.subr.mxu0 0.0
    %296 = vmatpush1.msra.mxu0 0.0
    %297 = vmatprep.subr.mxu0 0.0
    %298 = vmatpush1.msra.mxu0 0.0
    %299 = vmatprep.subr.mxu0 0.0
    %300 = vmatpush1.msra.mxu0 0.0
    %301 = vmatprep.subr.mxu0 0.0
    %302 = vmatpush1.msra.mxu0 0.0
    %303 = vmatprep.subr.mxu0 0.0
    %304 = vmatpush1.msra.mxu0 0.0
    %305 = vmatprep.subr.mxu0 0.0
    %306 = vmatpush1.msra.mxu0 0.0
    %307 = vmatprep.subr.mxu0 0.0
    %308 = vmatpush1.msra.mxu0 0.0
    %309 = vmatprep.subr.mxu0 0.0
    %310 = vmatpush1.msra.mxu0 0.0
    %311 = vmatprep.subr.mxu0 0.0
    %312 = vmatpush1.msra.mxu0 0.0
    %313 = vmatprep.subr.mxu0 0.0
    %314 = vmatpush1.msra.mxu0 0.0
    %315 = vmatprep.subr.mxu0 0.0
    %316 = vmatpush1.msra.mxu0 0.0
    %317 = vmatprep.subr.mxu0 0.0
    %318 = vmatpush1.msra.mxu0 0.0
    %319 = vmatprep.subr.mxu0 0.0
    %320 = vmatpush1.msra.mxu0 0.0
    %321 = vmatprep.subr.mxu0 0.0
    %322 = vmatpush1.msra.mxu0 0.0
    %323 = vmatprep.subr.mxu0 0.0
    %324 = vmatpush1.msra.mxu0 0.0
    %325 = vmatprep.mubr.f32.mxu0 0.0
    %326 = vmatmul.mubr.f32.gmra.mrb[0].mxu0 %v244
    %v327 = vpop.f32.mrb[0].mxu0
    %v328 = vadd.f32 %v220, %v327
    %v329 = vpop.f32.mrb[0].mxu0
    %330 = vmatprep.mubr.f32.mxu0 0.0
    %331 = vmatmul.mubr.f32.gmra.mrb[0].mxu0 %v247
    %v332 = vpop.f32.mrb[0].mxu0
    %v333 = vadd.f32 %v225, %v332
    %v334 = vpop.f32.mrb[0].mxu0
    %335 = vmatprep.mubr.f32.mxu0 0.0
    %336 = vmatmul.mubr.f32.gmra.mrb[0].mxu0 %v250
    %v337 = vpop.f32.mrb[0].mxu0
    %v338 = vadd.f32 %v230, %v337
    %v339 = vpop.f32.mrb[0].mxu0
    %340 = vmatprep.mubr.f32.mxu0 0.0
    %341 = vmatmul.mubr.f32.gmra.mrb[0].mxu0 %v253
    %v342 = vpop.f32.mrb[0].mxu0
    %v343 = vadd.f32 %v235, %v342
    %v344 = vpop.f32.mrb[0].mxu0
    %345 = vmatprep.mubr.f32.mxu0 0.0
    %346 = vmatmul.mubr.f32.gmra.mrb[0].mxu0 %v256
    %v347 = vpop.f32.mrb[0].mxu0
    %v348 = vadd.f32 %v240, %v347
    %v349 = vpop.f32.mrb[0].mxu0
    %350 = vdwg.mxu0
    %v351 = vtanh.pop %v328
    %v352 = vtanh.pop %v333
    %v353 = vtanh.pop %v338
    %v354 = vtanh.pop %v343
    %v355 = vtanh.pop %v348
    %v356 = vld [vmem:[%s5] sm:$0xf]
    %v357 = vld [vmem:[%s6] sm:$0xf]
    %359 = vset.pattern.permute.xlu0 0
    %360 = vperm.xlu0 %359, %v357
    %v361 = vpop.permute.xlu0 %360
    %vm363 = vcmask 326656
    %v365 = vsel %vm363, %v356, 0
    %367 = vmatprep.subr.mxu0 0.0
    %368 = vmatpush1.msra.mxu0 %v351
    %369 = vmatprep.subr.mxu0 0.0
    %370 = vmatpush1.msra.mxu0 %v352
    %371 = vmatprep.subr.mxu0 0.0
    %372 = vmatpush1.msra.mxu0 %v353
    %373 = vmatprep.subr.mxu0 0.0
    %374 = vmatpush1.msra.mxu0 %v354
    %375 = vmatprep.subr.mxu0 0.0
    %376 = vmatpush1.msra.mxu0 %v355
    %377 = vmatprep.subr.mxu0 0.0
    %378 = vmatpush1.msra.mxu0 0.0
    %379 = vmatprep.subr.mxu0 0.0
    %380 = vmatpush1.msra.mxu0 0.0
    %381 = vmatprep.subr.mxu0 0.0
    %382 = vmatpush1.msra.mxu0 0.0
    %383 = vmatprep.subr.mxu0 0.0
    %384 = vmatpush1.msra.mxu0 0.0
    %385 = vmatprep.subr.mxu0 0.0
    %386 = vmatpush1.msra.mxu0 0.0
    %387 = vmatprep.subr.mxu0 0.0
    %388 = vmatpush1.msra.mxu0 0.0
    %389 = vmatprep.subr.mxu0 0.0
    %390 = vmatpush1.msra.mxu0 0.0
    %391 = vmatprep.subr.mxu0 0.0
    %392 = vmatpush1.msra.mxu0 0.0
    %393 = vmatprep.subr.mxu0 0.0
    %394 = vmatpush1.msra.mxu0 0.0
    %395 = vmatprep.subr.mxu0 0.0
    %396 = vmatpush1.msra.mxu0 0.0
    %397 = vmatprep.subr.mxu0 0.0
    %398 = vmatpush1.msra.mxu0 0.0
    %399 = vmatprep.subr.mxu0 0.0
    %400 = vmatpush1.msra.mxu0 0.0
    %401 = vmatprep.subr.mxu0 0.0
    %402 = vmatpush1.msra.mxu0 0.0
    %403 = vmatprep.subr.mxu0 0.0
    %404 = vmatpush1.msra.mxu0 0.0
    %405 = vmatprep.subr.mxu0 0.0
    %406 = vmatpush1.msra.mxu0 0.0
    %407 = vmatprep.subr.mxu0 0.0
    %408 = vmatpush1.msra.mxu0 0.0
    %409 = vmatprep.subr.mxu0 0.0
    %410 = vmatpush1.msra.mxu0 0.0
    %411 = vmatprep.subr.mxu0 0.0
    %412 = vmatpush1.msra.mxu0 0.0
    %413 = vmatprep.subr.mxu0 0.0
    %414 = vmatpush1.msra.mxu0 0.0
    %415 = vmatprep.subr.mxu0 0.0
    %416 = vmatpush1.msra.mxu0 0.0
    %417 = vmatprep.subr.mxu0 0.0
    %418 = vmatpush1.msra.mxu0 0.0
    %419 = vmatprep.subr.mxu0 0.0
    %420 = vmatpush1.msra.mxu0 0.0
    %421 = vmatprep.subr.mxu0 0.0
    %422 = vmatpush1.msra.mxu0 0.0
    %423 = vmatprep.subr.mxu0 0.0
    %424 = vmatpush1.msra.mxu0 0.0
    %425 = vmatprep.subr.mxu0 0.0
    %426 = vmatpush1.msra.mxu0 0.0
    %427 = vmatprep.subr.mxu0 0.0
    %428 = vmatpush1.msra.mxu0 0.0
    %429 = vmatprep.subr.mxu0 0.0
    %430 = vmatpush1.msra.mxu0 0.0
    %431 = vmatprep.mubr.f32.mxu0 0.0
    %432 = vmatmul.mubr.f32.gmra.mrb[0].mxu0 %v365
    %v433 = vpop.f32.mrb[0].mxu0
    %v434 = vadd.f32 %v361, %v433
    %v435 = vpop.f32.mrb[0].mxu0
    %436 = vdwg.mxu0
    %437 = vst [vmem:[#allocation2] sm:$0xf] %v434
    // Predicated region
    $region30: #{tpu_custom_call.1} parent=1 // pred_check
      _
    $region31: #{tpu_custom_call.1} parent=1 // pred_check_branch
      %439 = sbr.rel (0) target = $region33
    $region32: #{tpu_custom_call.1} parent=1 // pred_region
      %s441 = ssub.s32 64, 64
      %442 = vsyncadd [#allocation3], %s441
      %s444 = sshll.u32 [#allocation2], 4
      %s445 = int_to_ptr.vmem [resolvable:$true] %s444
      %447 = dma.vmem_to_hbm [thread:$0]  %s445, 64, %s7, [#allocation3]
    $region33: #{tpu_custom_call.1} parent=1 // pred_fallthru
      _
    // Predicated region
    $region34: #{tpu_custom_call.1} parent=1 // pred_check
      _
    $region35: #{tpu_custom_call.1} parent=1 // pred_check_branch
      %449 = sbr.rel (0) target = $region37
    $region36: #{tpu_custom_call.1} parent=1 // pred_region
      %450 = dma.done [#allocation3], 64
    $region37: #{tpu_custom_call.1} parent=1 // pred_fallthru
      _
    %451 = vsyncpa [#allocation3], 1

</llo_original>
